<compile_context>
chip_gen: v7x
topology: tpu7x:2x2x1
jax: 0.10.0
libtpu: 0.0.40
codegen_flags: <defaults>
</compile_context>

<pallas_src>
import jax
import jax.numpy as jnp
from jax.experimental import pallas as pl
from jax.experimental.pallas import tpu as pltpu


def icu_los_kernel(x_ref, w1t_ref, b1_ref, w2t_ref, b2_ref, w3t_ref, b3_ref,
                   o_ref):
    # Transpose the (tb, F) x tile once (smallest tensor in the chain) so the
    # whole chain is feature-major / lane-dense along the batch dimension.
    xT = jnp.transpose(x_ref[...]).astype(jnp.bfloat16)                # (F, tb)

    # fc1 (+ folded bn1) + relu.  Dropout is identity in eval mode.
    h1 = jnp.dot(w1t_ref[...], xT,
                 preferred_element_type=jnp.float32)                   # (H1, tb)
    h1 = jnp.maximum(h1 + b1_ref[...], 0.0)

    # fc2 (+ folded bn2) + relu
    h2 = jnp.dot(w2t_ref[...], h1.astype(jnp.bfloat16),
                 preferred_element_type=jnp.float32)                   # (H2, tb)
    h2 = jnp.maximum(h2 + b2_ref[...], 0.0)

    # fc3 -> lane-dense (1, tb) output row
    out_row = jnp.dot(w3t_ref[...], h2.astype(jnp.bfloat16),
                      preferred_element_type=jnp.float32)              # (1, tb)
    o_ref[...] = (out_row + b3_ref[...])[None].astype(o_ref.dtype)     # (1,1,tb)


def _round_up(n, m):
    return ((n + m - 1) // m) * m


def fold_params(params):
    """One-time param prep (hoisted out of the forward path).

    Folds eval-mode BatchNorm into the linears:
      (x @ w + b) * s + t  ==  x @ (w * s) + (b * s + t)
    and pre-transposes everything for the feature-major kernel.
    """
    (w1, b1, s1, t1, w2, b2, s2, t2, w3, b3) = params
    w1t = jnp.transpose(w1 * s1).astype(jnp.bfloat16)        # (H1, F)
    b1f = jnp.transpose(b1 * s1 + t1).astype(jnp.float32)    # (H1, 1)
    w2t = jnp.transpose(w2 * s2).astype(jnp.bfloat16)        # (H2, H1)
    b2f = jnp.transpose(b2 * s2 + t2).astype(jnp.float32)    # (H2, 1)
    w3t = jnp.transpose(w3).astype(jnp.bfloat16)              # (1, H2)
    b3f = b3.astype(jnp.float32)                               # (1, 1)
    return (w1t, b1f, w2t, b2f, w3t, b3f)


def icu_los_forward(x, folded, *, tile_b=2048):
    B, F = x.shape
    w1t, b1f, w2t, b2f, w3t, b3f = folded
    H1 = w1t.shape[0]
    H2 = w2t.shape[0]

    # Batch tile: multiple of 256 (MXU-native M / bf16 sublane packing), capped
    # at tile_b.  No forced split for small batches (serial grid on v5e/v6e).
    tb = max(256, min(int(tile_b), _round_up(B, 256)))
    num_tiles = pl.cdiv(B, tb)
    # Best-effort even tile count when the grid splits: the "parallel" axis is
    # sharded across v7x's two TensorCores, so an odd count strands one core.
    if num_tiles > 1 and num_tiles % 2 == 1:
        tb_alt = _round_up(pl.cdiv(B, num_tiles + 1), 256)
        if tb_alt >= 256 and pl.cdiv(B, tb_alt) % 2 == 0:
            tb = tb_alt
            num_tiles = pl.cdiv(B, tb)

    full = lambda i: (0, 0)  # constant operands: same block every grid step

    out = pl.pallas_call(
        icu_los_kernel,
        out_shape=jax.ShapeDtypeStruct((num_tiles, 1, tb), jnp.float32),
        grid_spec=pltpu.PrefetchScalarGridSpec(
            num_scalar_prefetch=0,
            grid=(num_tiles,),
            in_specs=[
                pl.BlockSpec((tb, F), lambda i: (i, 0)),   # x tile (f32, cast in kernel)
                pl.BlockSpec((H1, F), full),               # w1^T folded (bf16)
                pl.BlockSpec((H1, 1), full),               # b1 folded (f32)
                pl.BlockSpec((H2, H1), full),              # w2^T folded (bf16)
                pl.BlockSpec((H2, 1), full),               # b2 folded (f32)
                pl.BlockSpec((1, H2), full),               # w3^T (bf16)
                pl.BlockSpec((1, 1), full),                # b3 (f32)
            ],
            out_specs=pl.BlockSpec((1, 1, tb), lambda i: (i, 0, 0)),
        ),
        compiler_params=pltpu.CompilerParams(
            dimension_semantics=("parallel",)),
    )(x, w1t, b1f, w2t, b2f, w3t, b3f)

    # (num_tiles, 1, tb) row-major == batch order -> (B, 1).  The [:B] slice
    # drops any edge-tile padding rows (which hold unspecified data).
    return out.reshape(num_tiles * tb, 1)[:B]


def make_params(key, input_dim, hidden_dim=128, eps=1e-5):
    """Deterministic synthetic parameters matching ICU_LOS_Model.__init__ shapes."""
    h2 = hidden_dim // 2
    ks = jax.random.split(key, 6)

    def linear(kw, kb, fan_in, fan_out):
        bound = 1.0 / jnp.sqrt(fan_in)
        w = jax.random.uniform(kw, (fan_in, fan_out), jnp.float32, -bound, bound)
        b = jax.random.uniform(kb, (1, fan_out), jnp.float32, -bound, bound)
        return w, b

    w1, b1 = linear(ks[0], ks[1], input_dim, hidden_dim)
    w2, b2 = linear(ks[2], ks[3], hidden_dim, h2)
    w3, b3 = linear(ks[4], ks[5], h2, 1)

    # BatchNorm1d default init (gamma=1, beta=0, running_mean=0, running_var=1)
    # expressed as per-feature scale/shift: y = x*scale + shift.
    def bn_fold(dim):
        gamma = jnp.ones((1, dim), jnp.float32)
        beta = jnp.zeros((1, dim), jnp.float32)
        rmean = jnp.zeros((1, dim), jnp.float32)
        rvar = jnp.ones((1, dim), jnp.float32)
        scale = gamma / jnp.sqrt(rvar + eps)
        shift = beta - rmean * scale
        return scale, shift

    s1, t1 = bn_fold(hidden_dim)
    s2, t2 = bn_fold(h2)
    return (w1, b1, s1, t1, w2, b2, s2, t2, w3, b3)


def reference_forward(x, params):
    (w1, b1, s1, t1, w2, b2, s2, t2, w3, b3) = params
    h1 = jnp.maximum((x @ w1 + b1) * s1 + t1, 0.0)
    h2 = jnp.maximum((h1 @ w2 + b2) * s2 + t2, 0.0)
    return h2 @ w3 + b3


if __name__ == "__main__":
    key = jax.random.PRNGKey(0)
    k_x, k_p = jax.random.split(key)

    B, INPUT_DIM, HIDDEN = 256, 32, 128
    x = jax.random.normal(k_x, (B, INPUT_DIM), jnp.float32)
    params = make_params(k_p, INPUT_DIM, HIDDEN)
    folded = fold_params(params)           # one-time prep, hoisted out of forward

    out = icu_los_forward(x, folded)       # tb=256 -> grid=(1,)
    out = jax.block_until_ready(out)

    ref = reference_forward(x, params)     # f32 reference
    assert out.shape == (B, 1)
    # bf16 matmul operands with f32 accumulation -> slightly looser tolerance
    # (accepted inference-precision tradeoff).
    assert jnp.allclose(out, ref, atol=5e-2, rtol=5e-2), "mismatch vs reference"

    print("KERNEL_OK")
</pallas_src>

<mosaic_0001>
module attributes {stable_mosaic.version = 11 : i64} {
  func.func @icu_los_kernel(%arg0: i32, %arg1: memref<256x32xf32, #tpu.memory_space<vmem>>, %arg2: memref<128x32xbf16, #tpu.memory_space<vmem>>, %arg3: memref<128x1xf32, #tpu.memory_space<vmem>>, %arg4: memref<64x128xbf16, #tpu.memory_space<vmem>>, %arg5: memref<64x1xf32, #tpu.memory_space<vmem>>, %arg6: memref<1x64xbf16, #tpu.memory_space<vmem>>, %arg7: memref<1x1xf32, #tpu.memory_space<vmem>>, %arg8: memref<1x1x256xf32, #tpu.memory_space<vmem>>) attributes {dimension_semantics = [#tpu.dimension_semantics<parallel>], iteration_bounds = array<i64: 1>, scalar_prefetch = 0 : i64, scratch_operands = 0 : i64, tpu.core_type = #tpu.core_type<tc>, window_params = [{transform_indices = @transform_0, window_bounds = array<i64: 256, 32>}, {pipeline_mode = #tpu.pipeline_mode<synchronous>, transform_indices = @transform_1, window_bounds = array<i64: 128, 32>}, {pipeline_mode = #tpu.pipeline_mode<synchronous>, transform_indices = @transform_2, window_bounds = array<i64: 128, 1>}, {pipeline_mode = #tpu.pipeline_mode<synchronous>, transform_indices = @transform_3, window_bounds = array<i64: 64, 128>}, {pipeline_mode = #tpu.pipeline_mode<synchronous>, transform_indices = @transform_4, window_bounds = array<i64: 64, 1>}, {pipeline_mode = #tpu.pipeline_mode<synchronous>, transform_indices = @transform_5, window_bounds = array<i64: 1, 64>}, {pipeline_mode = #tpu.pipeline_mode<synchronous>, transform_indices = @transform_6, window_bounds = array<i64: 1, 1>}, {transform_indices = @transform_7, window_bounds = array<i64: 1, 1, 256>}]} {
    %c0 = arith.constant 0 : index
    %c0_0 = arith.constant 0 : index
    %0 = vector.load %arg1[%c0, %c0_0] : memref<256x32xf32, #tpu.memory_space<vmem>>, vector<256x32xf32>
    %1 = tpu.transpose %0, [1, 0] : vector<256x32xf32> -> vector<32x256xf32>
    %2 = arith.truncf %1 : vector<32x256xf32> to vector<32x256xbf16>
    %c0_1 = arith.constant 0 : index
    %c0_2 = arith.constant 0 : index
    %3 = vector.load %arg2[%c0_1, %c0_2] : memref<128x32xbf16, #tpu.memory_space<vmem>>, vector<128x32xbf16>
    %cst = arith.constant dense<0.000000e+00> : vector<128x256xf32>
    %4 = tpu.matmul %3, %2, %cst {dimension_numbers = #tpu.dot_dimension_numbers<[1], [0], [0], [1], [0, 0, 1, 1], [], []>} : vector<128x32xbf16>, vector<32x256xbf16>, vector<128x256xf32> -> vector<128x256xf32>
    %c0_3 = arith.constant 0 : index
    %c0_4 = arith.constant 0 : index
    %5 = vector.load %arg3[%c0_3, %c0_4] : memref<128x1xf32, #tpu.memory_space<vmem>>, vector<128x1xf32>
    %6 = vector.broadcast %5 : vector<128x1xf32> to vector<128x256xf32>
    %7 = arith.addf %4, %6 : vector<128x256xf32>
    %cst_5 = arith.constant 0.000000e+00 : f32
    %8 = vector.broadcast %cst_5 : f32 to vector<128x256xf32>
    %9 = arith.maximumf %7, %8 : vector<128x256xf32>
    %c0_6 = arith.constant 0 : index
    %c0_7 = arith.constant 0 : index
    %10 = vector.load %arg4[%c0_6, %c0_7] : memref<64x128xbf16, #tpu.memory_space<vmem>>, vector<64x128xbf16>
    %11 = arith.truncf %9 : vector<128x256xf32> to vector<128x256xbf16>
    %cst_8 = arith.constant dense<0.000000e+00> : vector<64x256xf32>
    %12 = tpu.matmul %10, %11, %cst_8 {dimension_numbers = #tpu.dot_dimension_numbers<[1], [0], [0], [1], [0, 0, 1, 1], [], []>} : vector<64x128xbf16>, vector<128x256xbf16>, vector<64x256xf32> -> vector<64x256xf32>
    %c0_9 = arith.constant 0 : index
    %c0_10 = arith.constant 0 : index
    %13 = vector.load %arg5[%c0_9, %c0_10] : memref<64x1xf32, #tpu.memory_space<vmem>>, vector<64x1xf32>
    %14 = vector.broadcast %13 : vector<64x1xf32> to vector<64x256xf32>
    %15 = arith.addf %12, %14 : vector<64x256xf32>
    %cst_11 = arith.constant 0.000000e+00 : f32
    %16 = vector.broadcast %cst_11 : f32 to vector<64x256xf32>
    %17 = arith.maximumf %15, %16 : vector<64x256xf32>
    %c0_12 = arith.constant 0 : index
    %c0_13 = arith.constant 0 : index
    %18 = vector.load %arg6[%c0_12, %c0_13] : memref<1x64xbf16, #tpu.memory_space<vmem>>, vector<1x64xbf16>
    %19 = arith.truncf %17 : vector<64x256xf32> to vector<64x256xbf16>
    %cst_14 = arith.constant dense<0.000000e+00> : vector<1x256xf32>
    %20 = tpu.matmul %18, %19, %cst_14 {dimension_numbers = #tpu.dot_dimension_numbers<[1], [0], [0], [1], [0, 0, 1, 1], [], []>} : vector<1x64xbf16>, vector<64x256xbf16>, vector<1x256xf32> -> vector<1x256xf32>
    %c0_15 = arith.constant 0 : index
    %c0_16 = arith.constant 0 : index
    %21 = vector.load %arg7[%c0_15, %c0_16] : memref<1x1xf32, #tpu.memory_space<vmem>>, vector<1x1xf32>
    %22 = vector.broadcast %21 : vector<1x1xf32> to vector<1x256xf32>
    %23 = arith.addf %20, %22 : vector<1x256xf32>
    %24 = vector.shape_cast %23 : vector<1x256xf32> to vector<1x1x256xf32>
    %c0_17 = arith.constant 0 : index
    %c0_18 = arith.constant 0 : index
    %c0_19 = arith.constant 0 : index
    %25 = vector.load %arg8[%c0_17, %c0_18, %c0_19] : memref<1x1x256xf32, #tpu.memory_space<vmem>>, vector<1x1x256xf32>
    tpu.vector_store %arg8[%c0_17, %c0_18, %c0_19], %24 {strides = array<i32>} : memref<1x1x256xf32, #tpu.memory_space<vmem>>, vector<1x1x256xf32>,
    return
  }
  func.func @transform_0(%arg0: i32) -> (i32, i32) {
    %c0_i32 = arith.constant 0 : i32
    %c0_i32_0 = arith.constant 0 : i32
    return %arg0, %c0_i32 : i32, i32
  }
  func.func @transform_1(%arg0: i32) -> (i32, i32) {
    %c0_i32 = arith.constant 0 : i32
    %c0_i32_0 = arith.constant 0 : i32
    %c0_i32_1 = arith.constant 0 : i32
    return %c0_i32, %c0_i32_0 : i32, i32
  }
  func.func @transform_2(%arg0: i32) -> (i32, i32) {
    %c0_i32 = arith.constant 0 : i32
    %c0_i32_0 = arith.constant 0 : i32
    %c0_i32_1 = arith.constant 0 : i32
    return %c0_i32, %c0_i32_0 : i32, i32
  }
  func.func @transform_3(%arg0: i32) -> (i32, i32) {
    %c0_i32 = arith.constant 0 : i32
    %c0_i32_0 = arith.constant 0 : i32
    %c0_i32_1 = arith.constant 0 : i32
    return %c0_i32, %c0_i32_0 : i32, i32
  }
  func.func @transform_4(%arg0: i32) -> (i32, i32) {
    %c0_i32 = arith.constant 0 : i32
    %c0_i32_0 = arith.constant 0 : i32
    %c0_i32_1 = arith.constant 0 : i32
    return %c0_i32, %c0_i32_0 : i32, i32
  }
  func.func @transform_5(%arg0: i32) -> (i32, i32) {
    %c0_i32 = arith.constant 0 : i32
    %c0_i32_0 = arith.constant 0 : i32
    %c0_i32_1 = arith.constant 0 : i32
    return %c0_i32, %c0_i32_0 : i32, i32
  }
  func.func @transform_6(%arg0: i32) -> (i32, i32) {
    %c0_i32 = arith.constant 0 : i32
    %c0_i32_0 = arith.constant 0 : i32
    %c0_i32_1 = arith.constant 0 : i32
    return %c0_i32, %c0_i32_0 : i32, i32
  }
  func.func @transform_7(%arg0: i32) -> (i32, i32, i32) {
    %c0_i32 = arith.constant 0 : i32
    %c0_i32_0 = arith.constant 0 : i32
    %c0_i32_1 = arith.constant 0 : i32
    return %arg0, %c0_i32, %c0_i32_0 : i32, i32, i32
  }
}

</mosaic_0001>

<llo_original>
// kernel: tpu_custom_call.1
$region0: #{tpu_custom_call.1}
  #allocation0 [shape = 'u32[]', space=smem, size = 0x4, offset = 0x4, fixed_abs, tag = 'smem constant byte address 0x4 - core index']
  #allocation1 [shape = 'u32[144,128]{1,0:T(1,128)}', space=vmem, size = 0x12000, scoped, tag = 'internal scratch']
  #allocation2 [shape = 'f32[1,1]{1,0:T(1,128)S(1)}', space=vmem, size = 0x200, scoped, tag = 'scoped memory for tpu_custom_call.1']
  %s0 = inlined_call_operand.vmem [shape: f32[256,32], index: 0, kind: input, shape index: {}]
  %s1 = inlined_call_operand.vmem [shape: bf16[128,32], index: 1, kind: input, shape index: {}]
  %s2 = inlined_call_operand.vmem [shape: f32[128,1], index: 2, kind: input, shape index: {}]
  %s3 = inlined_call_operand.vmem [shape: bf16[64,128], index: 3, kind: input, shape index: {}]
  %s4 = inlined_call_operand.vmem [shape: f32[64,1], index: 4, kind: input, shape index: {}]
  %s5 = inlined_call_operand.vmem [shape: bf16[1,64], index: 5, kind: input, shape index: {}]
  %s6 = inlined_call_operand.<no memory space> [shape: f32[1,1], index: 6, kind: input, shape index: {}]
  %s7 = inlined_call_operand.hbm [shape: f32[1,1,256], index: 7, kind: output, shape index: {}]
  %s8 = sld [smem:[#allocation0]]
  $region38: #{tpu_custom_call.1} parent=0
    _
  %s10 = ssub.s32 1, %s8
  %s11 = scalar_select 0, %s10, %s8
  %v12 = vstv %s6
  %13 = vst [vmem:[#allocation2] sm:$0x1] %v12
  $region1: #{tpu_custom_call.1} parent=0
    #allocation3 [shape = 'u8[1024]{0}', space=vmem, size = 0x400, scoped, tag = 'output window, operand 0, single buffered']
    #allocation4 [shape = 's32[1]{0}', space=sflag, size = 0x4, scoped, tag = 'scoped memory for tpu_custom_call.1']
    %14 = vsyncpa [#allocation4], 0
    // Predicated region
    $region2: #{tpu_custom_call.1} parent=1 // pred_check
      _
    $region3: #{tpu_custom_call.1} parent=1 // pred_check_branch
      %16 = sbr.rel (0) target = $region5
    $region4: #{tpu_custom_call.1} parent=1 // pred_region
      _
    $region5: #{tpu_custom_call.1} parent=1 // pred_fallthru
      _
    // Predicated region
    $region6: #{tpu_custom_call.1} parent=1 // pred_check
      _
    $region7: #{tpu_custom_call.1} parent=1 // pred_check_branch
      %18 = sbr.rel (0) target = $region9
    $region8: #{tpu_custom_call.1} parent=1 // pred_region
      _
    $region9: #{tpu_custom_call.1} parent=1 // pred_fallthru
      _
    // Predicated region
    $region10: #{tpu_custom_call.1} parent=1 // pred_check
      _
    $region11: #{tpu_custom_call.1} parent=1 // pred_check_branch
      %20 = sbr.rel (0) target = $region13
    $region12: #{tpu_custom_call.1} parent=1 // pred_region
      _
    $region13: #{tpu_custom_call.1} parent=1 // pred_fallthru
      _
    // Predicated region
    $region14: #{tpu_custom_call.1} parent=1 // pred_check
      _
    $region15: #{tpu_custom_call.1} parent=1 // pred_check_branch
      %22 = sbr.rel (0) target = $region17
    $region16: #{tpu_custom_call.1} parent=1 // pred_region
      _
    $region17: #{tpu_custom_call.1} parent=1 // pred_fallthru
      _
    // Predicated region
    $region18: #{tpu_custom_call.1} parent=1 // pred_check
      _
    $region19: #{tpu_custom_call.1} parent=1 // pred_check_branch
      %24 = sbr.rel (0) target = $region21
    $region20: #{tpu_custom_call.1} parent=1 // pred_region
      _
    $region21: #{tpu_custom_call.1} parent=1 // pred_fallthru
      _
    // Predicated region
    $region22: #{tpu_custom_call.1} parent=1 // pred_check
      _
    $region23: #{tpu_custom_call.1} parent=1 // pred_check_branch
      %26 = sbr.rel (0) target = $region25
    $region24: #{tpu_custom_call.1} parent=1 // pred_region
      _
    $region25: #{tpu_custom_call.1} parent=1 // pred_fallthru
      _
    // Predicated region
    $region26: #{tpu_custom_call.1} parent=1 // pred_check
      _
    $region27: #{tpu_custom_call.1} parent=1 // pred_check_branch
      %28 = sbr.rel (0) target = $region29
    $region28: #{tpu_custom_call.1} parent=1 // pred_region
      _
    $region29: #{tpu_custom_call.1} parent=1 // pred_fallthru
      _
    %v30 = vld [vmem:[%s0] sm:$0xff]
    %v31 = vld [vmem:[%s0 + $0x8] sm:$0xff]
    %v32 = vld [vmem:[%s0 + $0x10] sm:$0xff]
    %v33 = vld [vmem:[%s0 + $0x18] sm:$0xff]
    %v34 = vld [vmem:[%s0 + $0x20] sm:$0xff]
    %v35 = vld [vmem:[%s0 + $0x28] sm:$0xff]
    %v36 = vld [vmem:[%s0 + $0x30] sm:$0xff]
    %v37 = vld [vmem:[%s0 + $0x38] sm:$0xff]
    %v38 = vld [vmem:[%s0 + $0x40] sm:$0xff]
    %v39 = vld [vmem:[%s0 + $0x48] sm:$0xff]
    %v40 = vld [vmem:[%s0 + $0x50] sm:$0xff]
    %v41 = vld [vmem:[%s0 + $0x58] sm:$0xff]
    %v42 = vld [vmem:[%s0 + $0x60] sm:$0xff]
    %v43 = vld [vmem:[%s0 + $0x68] sm:$0xff]
    %v44 = vld [vmem:[%s0 + $0x70] sm:$0xff]
    %v45 = vld [vmem:[%s0 + $0x78] sm:$0xff]
    %v46 = vld [vmem:[%s0 + $0x80] sm:$0xff]
    %v47 = vld [vmem:[%s0 + $0x88] sm:$0xff]
    %v48 = vld [vmem:[%s0 + $0x90] sm:$0xff]
    %v49 = vld [vmem:[%s0 + $0x98] sm:$0xff]
    %v50 = vld [vmem:[%s0 + $0xa0] sm:$0xff]
    %v51 = vld [vmem:[%s0 + $0xa8] sm:$0xff]
    %v52 = vld [vmem:[%s0 + $0xb0] sm:$0xff]
    %v53 = vld [vmem:[%s0 + $0xb8] sm:$0xff]
    %v54 = vld [vmem:[%s0 + $0xc0] sm:$0xff]
    %v55 = vld [vmem:[%s0 + $0xc8] sm:$0xff]
    %v56 = vld [vmem:[%s0 + $0xd0] sm:$0xff]
    %v57 = vld [vmem:[%s0 + $0xd8] sm:$0xff]
    %v58 = vld [vmem:[%s0 + $0xe0] sm:$0xff]
    %v59 = vld [vmem:[%s0 + $0xe8] sm:$0xff]
    %v60 = vld [vmem:[%s0 + $0xf0] sm:$0xff]
    %v61 = vld [vmem:[%s0 + $0xf8] sm:$0xff]
    %62 = vxpose.xlu0.b32.start [1/16] %v30, 128
    %63 = vxpose.xlu0.b32.cont [2/16] %v31, 128
    %64 = vxpose.xlu0.b32.cont [3/16] %v32, 128
    %65 = vxpose.xlu0.b32.cont [4/16] %v33, 128
    %66 = vxpose.xlu0.b32.cont [5/16] %v34, 128
    %67 = vxpose.xlu0.b32.cont [6/16] %v35, 128
    %68 = vxpose.xlu0.b32.cont [7/16] %v36, 128
    %69 = vxpose.xlu0.b32.cont [8/16] %v37, 128
    %70 = vxpose.xlu0.b32.cont [9/16] %v38, 128
    %71 = vxpose.xlu0.b32.cont [10/16] %v39, 128
    %72 = vxpose.xlu0.b32.cont [11/16] %v40, 128
    %73 = vxpose.xlu0.b32.cont [12/16] %v41, 128
    %74 = vxpose.xlu0.b32.cont [13/16] %v42, 128
    %75 = vxpose.xlu0.b32.cont [14/16] %v43, 128
    %76 = vxpose.xlu0.b32.cont [15/16] %v44, 128
    %77 = vxpose.xlu0.b32.end [16/16] %v45, 128
    %v78 = vpop.trf.xlu0
    %v79 = vpop.trf.xlu0
    %v80 = vpop.trf.xlu0
    %v81 = vpop.trf.xlu0
    %v82 = vpop.trf.xlu0
    %v83 = vpop.trf.xlu0
    %v84 = vpop.trf.xlu0
    %v85 = vpop.trf.xlu0
    %v86 = vpop.trf.xlu0
    %v87 = vpop.trf.xlu0
    %v88 = vpop.trf.xlu0
    %v89 = vpop.trf.xlu0
    %v90 = vpop.trf.xlu0
    %v91 = vpop.trf.xlu0
    %v92 = vpop.trf.xlu0
    %v93 = vpop.trf.xlu0
    %94 = vxpose.xlu0.b32.start [1/16] %v46, 128
    %95 = vxpose.xlu0.b32.cont [2/16] %v47, 128
    %96 = vxpose.xlu0.b32.cont [3/16] %v48, 128
    %97 = vxpose.xlu0.b32.cont [4/16] %v49, 128
    %98 = vxpose.xlu0.b32.cont [5/16] %v50, 128
    %99 = vxpose.xlu0.b32.cont [6/16] %v51, 128
    %100 = vxpose.xlu0.b32.cont [7/16] %v52, 128
    %101 = vxpose.xlu0.b32.cont [8/16] %v53, 128
    %102 = vxpose.xlu0.b32.cont [9/16] %v54, 128
    %103 = vxpose.xlu0.b32.cont [10/16] %v55, 128
    %104 = vxpose.xlu0.b32.cont [11/16] %v56, 128
    %105 = vxpose.xlu0.b32.cont [12/16] %v57, 128
    %106 = vxpose.xlu0.b32.cont [13/16] %v58, 128
    %107 = vxpose.xlu0.b32.cont [14/16] %v59, 128
    %108 = vxpose.xlu0.b32.cont [15/16] %v60, 128
    %109 = vxpose.xlu0.b32.end [16/16] %v61, 128
    %v110 = vpop.trf.xlu0
    %v111 = vpop.trf.xlu0
    %v112 = vpop.trf.xlu0
    %v113 = vpop.trf.xlu0
    %v114 = vpop.trf.xlu0
    %v115 = vpop.trf.xlu0
    %v116 = vpop.trf.xlu0
    %v117 = vpop.trf.xlu0
    %v118 = vpop.trf.xlu0
    %v119 = vpop.trf.xlu0
    %v120 = vpop.trf.xlu0
    %v121 = vpop.trf.xlu0
    %v122 = vpop.trf.xlu0
    %v123 = vpop.trf.xlu0
    %v124 = vpop.trf.xlu0
    %v125 = vpop.trf.xlu0
    %v126 = vpack.c.bf16 %v79, %v78
    %v127 = vpack.c.bf16 %v111, %v110
    %v128 = vpack.c.bf16 %v81, %v80
    %v129 = vpack.c.bf16 %v113, %v112
    %v130 = vld [vmem:[%s1] sm:$0xf]
    %v131 = vld [vmem:[%s1 + $0x4] sm:$0xf]
    %v132 = vld [vmem:[%s1 + $0x8] sm:$0xf]
    %v133 = vld [vmem:[%s1 + $0xc] sm:$0xf]
    %v134 = vld [vmem:[%s1 + $0x10] sm:$0xf]
    %v135 = vld [vmem:[%s1 + $0x14] sm:$0xf]
    %v136 = vld [vmem:[%s1 + $0x18] sm:$0xf]
    %v137 = vld [vmem:[%s1 + $0x1c] sm:$0xf]
    %v138 = vld [vmem:[%s1 + $0x20] sm:$0xf]
    %v139 = vld [vmem:[%s1 + $0x24] sm:$0xf]
    %v140 = vld [vmem:[%s1 + $0x28] sm:$0xf]
    %v141 = vld [vmem:[%s1 + $0x2c] sm:$0xf]
    %v142 = vld [vmem:[%s1 + $0x30] sm:$0xf]
    %v143 = vld [vmem:[%s1 + $0x34] sm:$0xf]
    %v144 = vld [vmem:[%s1 + $0x38] sm:$0xf]
    %v145 = vld [vmem:[%s1 + $0x3c] sm:$0xf]
    %v146 = vld [vmem:[%s2] sm:$0xff]
    %v147 = vld [vmem:[%s2 + $0x8] sm:$0xff]
    %v148 = vld [vmem:[%s2 + $0x10] sm:$0xff]
    %v149 = vld [vmem:[%s2 + $0x18] sm:$0xff]
    %v150 = vld [vmem:[%s2 + $0x20] sm:$0xff]
    %v151 = vld [vmem:[%s2 + $0x28] sm:$0xff]
    %v152 = vld [vmem:[%s2 + $0x30] sm:$0xff]
    %v153 = vld [vmem:[%s2 + $0x38] sm:$0xff]
    %v154 = vld [vmem:[%s2 + $0x40] sm:$0xff]
    %v155 = vld [vmem:[%s2 + $0x48] sm:$0xff]
    %v156 = vld [vmem:[%s2 + $0x50] sm:$0xff]
    %v157 = vld [vmem:[%s2 + $0x58] sm:$0xff]
    %v158 = vld [vmem:[%s2 + $0x60] sm:$0xff]
    %v159 = vld [vmem:[%s2 + $0x68] sm:$0xff]
    %v160 = vld [vmem:[%s2 + $0x70] sm:$0xff]
    %v161 = vld [vmem:[%s2 + $0x78] sm:$0xff]
    %163 = vset.pattern.permute.xlu0 0
    %164 = vperm.xlu0 %163, %v146
    %v165 = vpop.permute.xlu0 %164
    %168 = vset.pattern.permute.xlu0 0
    %169 = vperm.xlu0 %168, %v147
    %v170 = vpop.permute.xlu0 %169
    %173 = vset.pattern.permute.xlu0 0
    %174 = vperm.xlu0 %173, %v148
    %v175 = vpop.permute.xlu0 %174
    %178 = vset.pattern.permute.xlu0 0
    %179 = vperm.xlu0 %178, %v149
    %v180 = vpop.permute.xlu0 %179
    %183 = vset.pattern.permute.xlu0 0
    %184 = vperm.xlu0 %183, %v150
    %v185 = vpop.permute.xlu0 %184
    %188 = vset.pattern.permute.xlu0 0
    %189 = vperm.xlu0 %188, %v151
    %v190 = vpop.permute.xlu0 %189
    %193 = vset.pattern.permute.xlu0 0
    %194 = vperm.xlu0 %193, %v152
    %v195 = vpop.permute.xlu0 %194
    %198 = vset.pattern.permute.xlu0 0
    %199 = vperm.xlu0 %198, %v153
    %v200 = vpop.permute.xlu0 %199
    %203 = vset.pattern.permute.xlu0 0
    %204 = vperm.xlu0 %203, %v154
    %v205 = vpop.permute.xlu0 %204
    %208 = vset.pattern.permute.xlu0 0
    %209 = vperm.xlu0 %208, %v155
    %v210 = vpop.permute.xlu0 %209
    %213 = vset.pattern.permute.xlu0 0
    %214 = vperm.xlu0 %213, %v156
    %v215 = vpop.permute.xlu0 %214
    %218 = vset.pattern.permute.xlu0 0
    %219 = vperm.xlu0 %218, %v157
    %v220 = vpop.permute.xlu0 %219
    %223 = vset.pattern.permute.xlu0 0
    %224 = vperm.xlu0 %223, %v158
    %v225 = vpop.permute.xlu0 %224
    %228 = vset.pattern.permute.xlu0 0
    %229 = vperm.xlu0 %228, %v159
    %v230 = vpop.permute.xlu0 %229
    %233 = vset.pattern.permute.xlu0 0
    %234 = vperm.xlu0 %233, %v160
    %v235 = vpop.permute.xlu0 %234
    %238 = vset.pattern.permute.xlu0 0
    %239 = vperm.xlu0 %238, %v161
    %v240 = vpop.permute.xlu0 %239
    %v258 = vunpack.c.l.b16 %v130
    %v259 = vunpack.c.l.b16 %v131
    %v260 = vunpack.c.l.b16 %v132
    %v261 = vunpack.c.l.b16 %v133
    %v262 = vunpack.c.l.b16 %v134
    %v263 = vunpack.c.l.b16 %v135
    %v264 = vunpack.c.l.b16 %v136
    %v265 = vunpack.c.l.b16 %v137
    %v266 = vunpack.c.l.b16 %v138
    %v267 = vunpack.c.l.b16 %v139
    %v268 = vunpack.c.l.b16 %v140
    %v269 = vunpack.c.l.b16 %v141
    %v270 = vunpack.c.l.b16 %v142
    %v271 = vunpack.c.l.b16 %v143
    %v272 = vunpack.c.l.b16 %v144
    %v273 = vunpack.c.l.b16 %v145
    %v274 = vpack.c.b16 %v259, %v258
    %v275 = vpack.c.b16 %v261, %v260
    %v276 = vpack.c.b16 %v263, %v262
    %v277 = vpack.c.b16 %v265, %v264
    %v278 = vpack.c.b16 %v267, %v266
    %v279 = vpack.c.b16 %v269, %v268
    %v280 = vpack.c.b16 %v271, %v270
    %v281 = vpack.c.b16 %v273, %v272
    %vm282 = vcmask 261120
    %v284 = vsel %vm282, %v274, 0
    %v287 = vsel %vm282, %v275, 0
    %v290 = vsel %vm282, %v276, 0
    %v293 = vsel %vm282, %v277, 0
    %v296 = vsel %vm282, %v278, 0
    %v299 = vsel %vm282, %v279, 0
    %v302 = vsel %vm282, %v280, 0
    %v305 = vsel %vm282, %v281, 0
    %307 = vmatprep.subr.bf16.mxu0 %v127
    %308 = vmatpush1.bf16.msra.mxu0 %v126
    %309 = vmatprep.subr.bf16.mxu0 %v129
    %310 = vmatpush1.bf16.msra.mxu0 %v128
    %311 = vmatprep.subr.bf16.mxu0 0
    %312 = vmatpush1.bf16.msra.mxu0 0
    %313 = vmatprep.subr.bf16.mxu0 0
    %314 = vmatpush1.bf16.msra.mxu0 0
    %315 = vmatprep.subr.bf16.mxu0 0
    %316 = vmatpush1.bf16.msra.mxu0 0
    %317 = vmatprep.subr.bf16.mxu0 0
    %318 = vmatpush1.bf16.msra.mxu0 0
    %319 = vmatprep.subr.bf16.mxu0 0
    %320 = vmatpush1.bf16.msra.mxu0 0
    %321 = vmatprep.subr.bf16.mxu0 0
    %322 = vmatpush1.bf16.msra.mxu0 0
    %323 = vmatprep.subr.bf16.mxu0 0
    %324 = vmatpush1.bf16.msra.mxu0 0
    %325 = vmatprep.subr.bf16.mxu0 0
    %326 = vmatpush1.bf16.msra.mxu0 0
    %327 = vmatprep.subr.bf16.mxu0 0
    %328 = vmatpush1.bf16.msra.mxu0 0
    %329 = vmatprep.subr.bf16.mxu0 0
    %330 = vmatpush1.bf16.msra.mxu0 0
    %331 = vmatprep.subr.bf16.mxu0 0
    %332 = vmatpush1.bf16.msra.mxu0 0
    %333 = vmatprep.subr.bf16.mxu0 0
    %334 = vmatpush1.bf16.msra.mxu0 0
    %335 = vmatprep.subr.bf16.mxu0 0
    %336 = vmatpush1.bf16.msra.mxu0 0
    %337 = vmatprep.subr.bf16.mxu0 0
    %338 = vmatpush1.bf16.msra.mxu0 0
    %339 = vmatprep.mubr.bf16.mxu0 0
    %340 = vmatmul.mubr.bf16.gmra.mrb[0].mxu0 %v284
    %v341 = vpop.f32.mrb[0].mxu0
    %v342 = vadd.f32 %v165, %v341
    %v343 = vpop.f32.mrb[0].mxu0
    %v344 = vadd.f32 %v165, %v343
    %v345 = vpop.f32.mrb[0].mxu0
    %v346 = vadd.f32 %v170, %v345
    %v347 = vpop.f32.mrb[0].mxu0
    %v348 = vadd.f32 %v170, %v347
    %349 = vmatprep.mubr.bf16.mxu0 0
    %350 = vmatmul.mubr.bf16.gmra.mrb[0].mxu0 %v287
    %v351 = vpop.f32.mrb[0].mxu0
    %v352 = vadd.f32 %v175, %v351
    %v353 = vpop.f32.mrb[0].mxu0
    %v354 = vadd.f32 %v175, %v353
    %v355 = vpop.f32.mrb[0].mxu0
    %v356 = vadd.f32 %v180, %v355
    %v357 = vpop.f32.mrb[0].mxu0
    %v358 = vadd.f32 %v180, %v357
    %359 = vmatprep.mubr.bf16.mxu0 0
    %360 = vmatmul.mubr.bf16.gmra.mrb[0].mxu0 %v290
    %v361 = vpop.f32.mrb[0].mxu0
    %v362 = vadd.f32 %v185, %v361
    %v363 = vpop.f32.mrb[0].mxu0
    %v364 = vadd.f32 %v185, %v363
    %v365 = vpop.f32.mrb[0].mxu0
    %v366 = vadd.f32 %v190, %v365
    %v367 = vpop.f32.mrb[0].mxu0
    %v368 = vadd.f32 %v190, %v367
    %369 = vmatprep.mubr.bf16.mxu0 0
    %370 = vmatmul.mubr.bf16.gmra.mrb[0].mxu0 %v293
    %v371 = vpop.f32.mrb[0].mxu0
    %v372 = vadd.f32 %v195, %v371
    %v373 = vpop.f32.mrb[0].mxu0
    %v374 = vadd.f32 %v195, %v373
    %v375 = vpop.f32.mrb[0].mxu0
    %v376 = vadd.f32 %v200, %v375
    %v377 = vpop.f32.mrb[0].mxu0
    %v378 = vadd.f32 %v200, %v377
    %379 = vmatprep.mubr.bf16.mxu0 0
    %380 = vmatmul.mubr.bf16.gmra.mrb[0].mxu0 %v296
    %v381 = vpop.f32.mrb[0].mxu0
    %v382 = vadd.f32 %v205, %v381
    %v383 = vpop.f32.mrb[0].mxu0
    %v384 = vadd.f32 %v205, %v383
    %v385 = vpop.f32.mrb[0].mxu0
    %v386 = vadd.f32 %v210, %v385
    %v387 = vpop.f32.mrb[0].mxu0
    %v388 = vadd.f32 %v210, %v387
    %389 = vmatprep.mubr.bf16.mxu0 0
    %390 = vmatmul.mubr.bf16.gmra.mrb[0].mxu0 %v299
    %v391 = vpop.f32.mrb[0].mxu0
    %v392 = vadd.f32 %v215, %v391
    %v393 = vpop.f32.mrb[0].mxu0
    %v394 = vadd.f32 %v215, %v393
    %v395 = vpop.f32.mrb[0].mxu0
    %v396 = vadd.f32 %v220, %v395
    %v397 = vpop.f32.mrb[0].mxu0
    %v398 = vadd.f32 %v220, %v397
    %399 = vmatprep.mubr.bf16.mxu0 0
    %400 = vmatmul.mubr.bf16.gmra.mrb[0].mxu0 %v302
    %v401 = vpop.f32.mrb[0].mxu0
    %v402 = vadd.f32 %v225, %v401
    %v403 = vpop.f32.mrb[0].mxu0
    %v404 = vadd.f32 %v225, %v403
    %v405 = vpop.f32.mrb[0].mxu0
    %v406 = vadd.f32 %v230, %v405
    %v407 = vpop.f32.mrb[0].mxu0
    %v408 = vadd.f32 %v230, %v407
    %409 = vmatprep.mubr.bf16.mxu0 0
    %410 = vmatmul.mubr.bf16.gmra.mrb[0].mxu0 %v305
    %v411 = vpop.f32.mrb[0].mxu0
    %v412 = vadd.f32 %v235, %v411
    %v413 = vpop.f32.mrb[0].mxu0
    %v414 = vadd.f32 %v235, %v413
    %v415 = vpop.f32.mrb[0].mxu0
    %v416 = vadd.f32 %v240, %v415
    %v417 = vpop.f32.mrb[0].mxu0
    %v418 = vadd.f32 %v240, %v417
    %419 = vdwg.mxu0
    %v420 = vmax.f32 %v342, 0.0
    %v421 = vmax.f32 %v344, 0.0
    %v422 = vmax.f32 %v346, 0.0
    %v423 = vmax.f32 %v348, 0.0
    %v424 = vmax.f32 %v352, 0.0
    %v425 = vmax.f32 %v354, 0.0
    %v426 = vmax.f32 %v356, 0.0
    %v427 = vmax.f32 %v358, 0.0
    %v428 = vmax.f32 %v362, 0.0
    %v429 = vmax.f32 %v364, 0.0
    %v430 = vmax.f32 %v366, 0.0
    %v431 = vmax.f32 %v368, 0.0
    %v432 = vmax.f32 %v372, 0.0
    %v433 = vmax.f32 %v374, 0.0
    %v434 = vmax.f32 %v376, 0.0
    %v435 = vmax.f32 %v378, 0.0
    %v436 = vmax.f32 %v382, 0.0
    %v437 = vmax.f32 %v384, 0.0
    %v438 = vmax.f32 %v386, 0.0
    %v439 = vmax.f32 %v388, 0.0
    %v440 = vmax.f32 %v392, 0.0
    %v441 = vmax.f32 %v394, 0.0
    %v442 = vmax.f32 %v396, 0.0
    %v443 = vmax.f32 %v398, 0.0
    %v444 = vmax.f32 %v402, 0.0
    %v445 = vmax.f32 %v404, 0.0
    %v446 = vmax.f32 %v406, 0.0
    %v447 = vmax.f32 %v408, 0.0
    %v448 = vmax.f32 %v412, 0.0
    %v449 = vmax.f32 %v414, 0.0
    %v450 = vmax.f32 %v416, 0.0
    %v451 = vmax.f32 %v418, 0.0
    %v452 = vld [vmem:[%s3] sm:$0xf]
    %v453 = vld [vmem:[%s3 + $0x4] sm:$0xf]
    %v454 = vld [vmem:[%s3 + $0x8] sm:$0xf]
    %v455 = vld [vmem:[%s3 + $0xc] sm:$0xf]
    %v456 = vld [vmem:[%s3 + $0x10] sm:$0xf]
    %v457 = vld [vmem:[%s3 + $0x14] sm:$0xf]
    %v458 = vld [vmem:[%s3 + $0x18] sm:$0xf]
    %v459 = vld [vmem:[%s3 + $0x1c] sm:$0xf]
    %v460 = vpack.c.bf16 %v422, %v420
    %v461 = vpack.c.bf16 %v423, %v421
    %v462 = vpack.c.bf16 %v426, %v424
    %v463 = vpack.c.bf16 %v427, %v425
    %v464 = vpack.c.bf16 %v430, %v428
    %v465 = vpack.c.bf16 %v431, %v429
    %v466 = vpack.c.bf16 %v434, %v432
    %v467 = vpack.c.bf16 %v435, %v433
    %v468 = vpack.c.bf16 %v438, %v436
    %v469 = vpack.c.bf16 %v439, %v437
    %v470 = vpack.c.bf16 %v442, %v440
    %v471 = vpack.c.bf16 %v443, %v441
    %v472 = vpack.c.bf16 %v446, %v444
    %v473 = vpack.c.bf16 %v447, %v445
    %v474 = vpack.c.bf16 %v450, %v448
    %v475 = vpack.c.bf16 %v451, %v449
    %v476 = vld [vmem:[%s4] sm:$0xff]
    %v477 = vld [vmem:[%s4 + $0x8] sm:$0xff]
    %v478 = vld [vmem:[%s4 + $0x10] sm:$0xff]
    %v479 = vld [vmem:[%s4 + $0x18] sm:$0xff]
    %v480 = vld [vmem:[%s4 + $0x20] sm:$0xff]
    %v481 = vld [vmem:[%s4 + $0x28] sm:$0xff]
    %v482 = vld [vmem:[%s4 + $0x30] sm:$0xff]
    %v483 = vld [vmem:[%s4 + $0x38] sm:$0xff]
    %485 = vset.pattern.permute.xlu0 0
    %486 = vperm.xlu0 %485, %v476
    %v487 = vpop.permute.xlu0 %486
    %490 = vset.pattern.permute.xlu0 0
    %491 = vperm.xlu0 %490, %v477
    %v492 = vpop.permute.xlu0 %491
    %495 = vset.pattern.permute.xlu0 0
    %496 = vperm.xlu0 %495, %v478
    %v497 = vpop.permute.xlu0 %496
    %500 = vset.pattern.permute.xlu0 0
    %501 = vperm.xlu0 %500, %v479
    %v502 = vpop.permute.xlu0 %501
    %505 = vset.pattern.permute.xlu0 0
    %506 = vperm.xlu0 %505, %v480
    %v507 = vpop.permute.xlu0 %506
    %510 = vset.pattern.permute.xlu0 0
    %511 = vperm.xlu0 %510, %v481
    %v512 = vpop.permute.xlu0 %511
    %515 = vset.pattern.permute.xlu0 0
    %516 = vperm.xlu0 %515, %v482
    %v517 = vpop.permute.xlu0 %516
    %520 = vset.pattern.permute.xlu0 0
    %521 = vperm.xlu0 %520, %v483
    %v522 = vpop.permute.xlu0 %521
    %v532 = vunpack.c.l.b16 %v452
    %v533 = vunpack.c.l.b16 %v453
    %v534 = vunpack.c.l.b16 %v454
    %v535 = vunpack.c.l.b16 %v455
    %v536 = vunpack.c.l.b16 %v456
    %v537 = vunpack.c.l.b16 %v457
    %v538 = vunpack.c.l.b16 %v458
    %v539 = vunpack.c.l.b16 %v459
    %v540 = vpack.c.b16 %v533, %v532
    %v541 = vpack.c.b16 %v535, %v534
    %v542 = vpack.c.b16 %v537, %v536
    %v543 = vpack.c.b16 %v539, %v538
    %548 = vmatprep.subr.bf16.mxu0 %v461
    %549 = vmatpush1.bf16.msra.mxu0 %v460
    %550 = vmatprep.subr.bf16.mxu0 %v463
    %551 = vmatpush1.bf16.msra.mxu0 %v462
    %552 = vmatprep.subr.bf16.mxu0 %v465
    %553 = vmatpush1.bf16.msra.mxu0 %v464
    %554 = vmatprep.subr.bf16.mxu0 %v467
    %555 = vmatpush1.bf16.msra.mxu0 %v466
    %556 = vmatprep.subr.bf16.mxu0 %v469
    %557 = vmatpush1.bf16.msra.mxu0 %v468
    %558 = vmatprep.subr.bf16.mxu0 %v471
    %559 = vmatpush1.bf16.msra.mxu0 %v470
    %560 = vmatprep.subr.bf16.mxu0 %v473
    %561 = vmatpush1.bf16.msra.mxu0 %v472
    %562 = vmatprep.subr.bf16.mxu0 %v475
    %563 = vmatpush1.bf16.msra.mxu0 %v474
    %564 = vmatprep.subr.bf16.mxu0 0
    %565 = vmatpush1.bf16.msra.mxu0 0
    %566 = vmatprep.subr.bf16.mxu0 0
    %567 = vmatpush1.bf16.msra.mxu0 0
    %568 = vmatprep.subr.bf16.mxu0 0
    %569 = vmatpush1.bf16.msra.mxu0 0
    %570 = vmatprep.subr.bf16.mxu0 0
    %571 = vmatpush1.bf16.msra.mxu0 0
    %572 = vmatprep.subr.bf16.mxu0 0
    %573 = vmatpush1.bf16.msra.mxu0 0
    %574 = vmatprep.subr.bf16.mxu0 0
    %575 = vmatpush1.bf16.msra.mxu0 0
    %576 = vmatprep.subr.bf16.mxu0 0
    %577 = vmatpush1.bf16.msra.mxu0 0
    %578 = vmatprep.subr.bf16.mxu0 0
    %579 = vmatpush1.bf16.msra.mxu0 0
    %580 = vmatprep.mubr.bf16.mxu0 0
    %581 = vmatmul.mubr.bf16.gmra.mrb[0].mxu0 %v540
    %v582 = vpop.f32.mrb[0].mxu0
    %v583 = vadd.f32 %v487, %v582
    %v584 = vpop.f32.mrb[0].mxu0
    %v585 = vadd.f32 %v487, %v584
    %v586 = vpop.f32.mrb[0].mxu0
    %v587 = vadd.f32 %v492, %v586
    %v588 = vpop.f32.mrb[0].mxu0
    %v589 = vadd.f32 %v492, %v588
    %590 = vmatprep.mubr.bf16.mxu0 0
    %591 = vmatmul.mubr.bf16.gmra.mrb[0].mxu0 %v541
    %v592 = vpop.f32.mrb[0].mxu0
    %v593 = vadd.f32 %v497, %v592
    %v594 = vpop.f32.mrb[0].mxu0
    %v595 = vadd.f32 %v497, %v594
    %v596 = vpop.f32.mrb[0].mxu0
    %v597 = vadd.f32 %v502, %v596
    %v598 = vpop.f32.mrb[0].mxu0
    %v599 = vadd.f32 %v502, %v598
    %600 = vmatprep.mubr.bf16.mxu0 0
    %601 = vmatmul.mubr.bf16.gmra.mrb[0].mxu0 %v542
    %v602 = vpop.f32.mrb[0].mxu0
    %v603 = vadd.f32 %v507, %v602
    %v604 = vpop.f32.mrb[0].mxu0
    %v605 = vadd.f32 %v507, %v604
    %v606 = vpop.f32.mrb[0].mxu0
    %v607 = vadd.f32 %v512, %v606
    %v608 = vpop.f32.mrb[0].mxu0
    %v609 = vadd.f32 %v512, %v608
    %610 = vmatprep.mubr.bf16.mxu0 0
    %611 = vmatmul.mubr.bf16.gmra.mrb[0].mxu0 %v543
    %v612 = vpop.f32.mrb[0].mxu0
    %v613 = vadd.f32 %v517, %v612
    %v614 = vpop.f32.mrb[0].mxu0
    %v615 = vadd.f32 %v517, %v614
    %v616 = vpop.f32.mrb[0].mxu0
    %v617 = vadd.f32 %v522, %v616
    %v618 = vpop.f32.mrb[0].mxu0
    %v619 = vadd.f32 %v522, %v618
    %620 = vdwg.mxu0
    %v621 = vmax.f32 %v583, 0.0
    %v622 = vmax.f32 %v585, 0.0
    %v623 = vmax.f32 %v587, 0.0
    %v624 = vmax.f32 %v589, 0.0
    %v625 = vmax.f32 %v593, 0.0
    %v626 = vmax.f32 %v595, 0.0
    %v627 = vmax.f32 %v597, 0.0
    %v628 = vmax.f32 %v599, 0.0
    %v629 = vmax.f32 %v603, 0.0
    %v630 = vmax.f32 %v605, 0.0
    %v631 = vmax.f32 %v607, 0.0
    %v632 = vmax.f32 %v609, 0.0
    %v633 = vmax.f32 %v613, 0.0
    %v634 = vmax.f32 %v615, 0.0
    %v635 = vmax.f32 %v617, 0.0
    %v636 = vmax.f32 %v619, 0.0
    %v637 = vld [vmem:[%s5] sm:$0x1]
    %v638 = vpack.c.bf16 %v623, %v621
    %v639 = vpack.c.bf16 %v624, %v622
    %v640 = vpack.c.bf16 %v627, %v625
    %v641 = vpack.c.bf16 %v628, %v626
    %v642 = vpack.c.bf16 %v631, %v629
    %v643 = vpack.c.bf16 %v632, %v630
    %v644 = vpack.c.bf16 %v635, %v633
    %v645 = vpack.c.bf16 %v636, %v634
    %v646 = vld [vmem:[#allocation2] sm:$0x1]
    %648 = vset.pattern.permute.xlu0 0
    %649 = vperm.xlu0 %648, %v646
    %v650 = vpop.permute.xlu0 %649
    %v652 = vlaneseq
    %v653 = vshrl.u32 %v652, 7
    %v654 = vsub.s32 0, %v653
    %v655 = vrot.slane %v650, %v654
    %vm656 = vcmask 523264
    %v658 = vsel %vm656, %v637, 0
    %660 = vmatprep.subr.bf16.mxu0 %v639
    %661 = vmatpush1.bf16.msra.mxu0 %v638
    %662 = vmatprep.subr.bf16.mxu0 %v641
    %663 = vmatpush1.bf16.msra.mxu0 %v640
    %664 = vmatprep.subr.bf16.mxu0 %v643
    %665 = vmatpush1.bf16.msra.mxu0 %v642
    %666 = vmatprep.subr.bf16.mxu0 %v645
    %667 = vmatpush1.bf16.msra.mxu0 %v644
    %668 = vmatprep.subr.bf16.mxu0 0
    %669 = vmatpush1.bf16.msra.mxu0 0
    %670 = vmatprep.subr.bf16.mxu0 0
    %671 = vmatpush1.bf16.msra.mxu0 0
    %672 = vmatprep.subr.bf16.mxu0 0
    %673 = vmatpush1.bf16.msra.mxu0 0
    %674 = vmatprep.subr.bf16.mxu0 0
    %675 = vmatpush1.bf16.msra.mxu0 0
    %676 = vmatprep.subr.bf16.mxu0 0
    %677 = vmatpush1.bf16.msra.mxu0 0
    %678 = vmatprep.subr.bf16.mxu0 0
    %679 = vmatpush1.bf16.msra.mxu0 0
    %680 = vmatprep.subr.bf16.mxu0 0
    %681 = vmatpush1.bf16.msra.mxu0 0
    %682 = vmatprep.subr.bf16.mxu0 0
    %683 = vmatpush1.bf16.msra.mxu0 0
    %684 = vmatprep.subr.bf16.mxu0 0
    %685 = vmatpush1.bf16.msra.mxu0 0
    %686 = vmatprep.subr.bf16.mxu0 0
    %687 = vmatpush1.bf16.msra.mxu0 0
    %688 = vmatprep.subr.bf16.mxu0 0
    %689 = vmatpush1.bf16.msra.mxu0 0
    %690 = vmatprep.subr.bf16.mxu0 0
    %691 = vmatpush1.bf16.msra.mxu0 0
    %692 = vmatprep.mubr.bf16.mxu0 0
    %693 = vmatmul.mubr.bf16.gmra.mrb[0].mxu0 %v658
    %v694 = vpop.f32.mrb[0].mxu0
    %v695 = vadd.f32 %v655, %v694
    %v696 = vpop.f32.mrb[0].mxu0
    %v697 = vadd.f32 %v655, %v696
    %v698 = vpop.f32.mrb[0].mxu0
    %v699 = vpop.f32.mrb[0].mxu0
    %700 = vdwg.mxu0
    %v703 = vcombine.low %v695, %v697
    %v705 = vunpack.c.l.s4 1966171168
    %v706 = vunpack.c.0.s8 %v705
    %v707 = vlaneseq
    %v708 = vshrl.u32 %v707, 7
    %v709 = vsub.s32 %v706, %v708
    %v710 = vrot.slane %v703, %v709
    %v712 = vunpack.c.l.s4 1966171168
    %v713 = vunpack.c.0.s8 %v712
    %v714 = vlaneseq
    %v715 = vshrl.u32 %v714, 7
    %v716 = vsub.s32 %v713, %v715
    %v717 = vrot.slane %v710, %v716
    %v719 = vlaneseq
    %vm720 = vcmp.ge.s32.totalorder %v719, 0
    %vm721 = vcmp.lt.s32.totalorder %v719, 256
    %vm722 = vmand %vm720, %vm721
    %723 = vst.msk [vmem:[#allocation3] sm:$0x3] %vm722, %v717
    // Predicated region
    $region30: #{tpu_custom_call.1} parent=1 // pred_check
      _
    $region31: #{tpu_custom_call.1} parent=1 // pred_check_branch
      %725 = sbr.rel (0) target = $region33
    $region32: #{tpu_custom_call.1} parent=1 // pred_region
      %s727 = ssub.s32 32, 32
      %728 = vsyncadd [#allocation4], %s727
      %s730 = sshll.u32 [#allocation3], 4
      %s731 = int_to_ptr.vmem [resolvable:$true] %s730
      %733 = dma.vmem_to_hbm [thread:$0]  %s731, 32, %s7, [#allocation4]
    $region33: #{tpu_custom_call.1} parent=1 // pred_fallthru
      _
    // Predicated region
    $region34: #{tpu_custom_call.1} parent=1 // pred_check
      _
    $region35: #{tpu_custom_call.1} parent=1 // pred_check_branch
      %735 = sbr.rel (0) target = $region37
    $region36: #{tpu_custom_call.1} parent=1 // pred_region
      %736 = dma.done [#allocation4], 32
    $region37: #{tpu_custom_call.1} parent=1 // pred_fallthru
      _
    %737 = vsyncpa [#allocation4], 1

</llo_original>
